<compile_context>
chip_gen: v7x
topology: tpu7x:2x2x1
jax: 0.10.0
libtpu: 0.0.40
codegen_flags: <defaults>
</compile_context>

<pallas_src>
import jax
import jax.numpy as jnp
from jax.experimental import pallas as pl
from jax.experimental.pallas import tpu as pltpu


def rnn_pool_fc_kernel(x_ref, wih_t_ref, whh_t_ref, b_ref, wfc_t_ref, bfc_ref,
                       out_ref):
    """Fused RNN + avg-pool + Linear forward.

    x_ref     : (T*B, D) bf16  time-major inputs, already flattened in wrapper
    wih_t_ref : (D, H)   bf16  input-to-hidden weight, transposed
    whh_t_ref : (H, H)   bf16  hidden-to-hidden weight, transposed
    b_ref     : (1, H)   f32   combined RNN bias (b_ih + b_hh)
    wfc_t_ref : (H, O)   bf16  final Linear weight, transposed, pre-scaled by 1/T
    bfc_ref   : (1, O)   f32   final Linear bias
    out_ref   : (B, O)   f32   output logits
    """
    TB, D = x_ref.shape
    B = out_ref.shape[0]
    T = TB // B

    # One big input projection for every timestep (off the serial critical path).
    # bf16 operands, f32 accumulation; single bias broadcast instead of T of them.
    pre_all = (jnp.dot(x_ref[...], wih_t_ref[...],
                       preferred_element_type=jnp.float32)
               + b_ref[...])                                  # (T*B, H) f32

    # Load W_hh^T only now, after the big matmul (live-range hygiene; 8 vregs bf16).
    whh_t = whh_t_ref[...]                                    # (H, H) bf16

    # Step 0: h0 == 0, so h @ W_hh^T vanishes.
    h = jnp.tanh(pre_all[0:B, :])                             # (B, H) f32
    acc = h

    # Remaining steps, fully unrolled (T is small and static). Slices are static
    # and (8,128)-tile aligned (B multiple of 8, H multiple of 128).
    for t in range(1, T):
        pre_t = pre_all[t * B:(t + 1) * B, :]
        h = jnp.tanh(pre_t + jnp.dot(h.astype(jnp.bfloat16), whh_t,
                                     preferred_element_type=jnp.float32))
        acc = acc + h

    # avg-pool's 1/T is folded into wfc_t in the wrapper; acc is the pooled sum.
    out_ref[...] = (jnp.dot(acc.astype(jnp.bfloat16), wfc_t_ref[...],
                            preferred_element_type=jnp.float32)
                    + bfc_ref[...]).astype(out_ref.dtype)


def rnn_with_pooling(x, params):
    """x: (B, T, D) batch_first, float32. Returns (B, O) logits (float32)."""
    B, T, D = x.shape
    H = params["w_hh"].shape[0]
    O = params["w_fc"].shape[0]
    # Static-slice / reshape assumptions used by the kernel (guard, don't fake it).
    assert B % 8 == 0 and H % 128 == 0, "kernel assumes B%8==0 and H%128==0"

    # Layout/dtype plumbing done once in the wrapper (free XLA work vs. in-kernel
    # relayouts): time-major + flattened x, transposed bf16 weights, combined bias,
    # and the 1/T pooling scale folded into the fc weight.
    x_rows = jnp.transpose(x, (1, 0, 2)).reshape(T * B, D).astype(jnp.bfloat16)
    wih_t = params["w_ih"].T.astype(jnp.bfloat16)                 # (D, H)
    whh_t = params["w_hh"].T.astype(jnp.bfloat16)                 # (H, H)
    wfc_t = (params["w_fc"].T / float(T)).astype(jnp.bfloat16)    # (H, O), incl. 1/T
    b_comb = (params["b_ih"] + params["b_hh"]).reshape(1, H).astype(jnp.float32)
    b_fc = params["b_fc"].reshape(1, O).astype(jnp.float32)

    return pl.pallas_call(
        rnn_pool_fc_kernel,
        out_shape=jax.ShapeDtypeStruct((B, O), jnp.float32),
        in_specs=[pl.BlockSpec(memory_space=pltpu.MemorySpace.VMEM)] * 6,
        out_specs=pl.BlockSpec(memory_space=pltpu.MemorySpace.VMEM),
    )(x_rows, wih_t, whh_t, b_comb, wfc_t, b_fc)


def reference_forward(x, params):
    """Pure-JAX f32 reference matching torch semantics exactly."""
    B, T, D = x.shape
    H = params["w_hh"].shape[0]
    with jax.default_matmul_precision("highest"):
        h = jnp.zeros((B, H), jnp.float32)
        outs = []
        for t in range(T):
            h = jnp.tanh(x[:, t, :] @ params["w_ih"].T
                         + h @ params["w_hh"].T
                         + params["b_ih"] + params["b_hh"])
            outs.append(h)
        out = jnp.stack(outs, axis=1)                 # (B, T, H)
        pooled = jnp.mean(out, axis=1)                # (B, H)
        return pooled @ params["w_fc"].T + params["b_fc"]


if __name__ == "__main__":
    # Small shapes consistent with the module: batch=8, seq=8, input=32,
    # hidden=128 (module default, lane-dense), output=2.
    B, T, D, H, O = 8, 8, 32, 128, 2

    key = jax.random.PRNGKey(0)
    kx, k1, k2, k3, k4, k5, k6 = jax.random.split(key, 7)

    x = jax.random.normal(kx, (B, T, D), dtype=jnp.float32)
    params = {
        "w_ih": 0.1 * jax.random.normal(k1, (H, D), dtype=jnp.float32),
        "w_hh": 0.1 * jax.random.normal(k2, (H, H), dtype=jnp.float32),
        "b_ih": 0.1 * jax.random.normal(k3, (H,), dtype=jnp.float32),
        "b_hh": 0.1 * jax.random.normal(k4, (H,), dtype=jnp.float32),
        "w_fc": 0.1 * jax.random.normal(k5, (O, H), dtype=jnp.float32),
        "b_fc": 0.1 * jax.random.normal(k6, (O,), dtype=jnp.float32),
    }

    out = rnn_with_pooling(x, params)
    out = jax.block_until_ready(out)

    ref = reference_forward(x, params)
    assert out.shape == (B, O)
    # Tolerance reflects bf16 MXU operand quantization compounding through the
    # T=8 recurrence (f32 reference uses 'highest' precision matmuls).
    assert jnp.allclose(out, ref, atol=3e-2, rtol=3e-2), (
        f"mismatch: max abs err {jnp.max(jnp.abs(out - ref))}")

    print("KERNEL_OK")
</pallas_src>

<mosaic_0001>
module attributes {stable_mosaic.version = 11 : i64} {
  func.func @rnn_pool_fc_kernel(%arg0: memref<64x32xbf16, #tpu.memory_space<vmem>>, %arg1: memref<32x128xbf16, #tpu.memory_space<vmem>>, %arg2: memref<128x128xbf16, #tpu.memory_space<vmem>>, %arg3: memref<1x128xf32, #tpu.memory_space<vmem>>, %arg4: memref<128x2xbf16, #tpu.memory_space<vmem>>, %arg5: memref<1x2xf32, #tpu.memory_space<vmem>>, %arg6: memref<8x2xf32, #tpu.memory_space<vmem>>) attributes {dimension_semantics = [], scalar_prefetch = 0 : i64, scratch_operands = 0 : i64, tpu.core_type = #tpu.core_type<tc>} {
    %c0 = arith.constant 0 : index
    %c0_0 = arith.constant 0 : index
    %0 = vector.load %arg0[%c0, %c0_0] : memref<64x32xbf16, #tpu.memory_space<vmem>>, vector<64x32xbf16>
    %c0_1 = arith.constant 0 : index
    %c0_2 = arith.constant 0 : index
    %1 = vector.load %arg1[%c0_1, %c0_2] : memref<32x128xbf16, #tpu.memory_space<vmem>>, vector<32x128xbf16>
    %cst = arith.constant dense<0.000000e+00> : vector<64x128xf32>
    %2 = tpu.matmul %0, %1, %cst {dimension_numbers = #tpu.dot_dimension_numbers<[1], [0], [0], [1], [0, 0, 1, 1], [], []>} : vector<64x32xbf16>, vector<32x128xbf16>, vector<64x128xf32> -> vector<64x128xf32>
    %c0_3 = arith.constant 0 : index
    %c0_4 = arith.constant 0 : index
    %3 = vector.load %arg3[%c0_3, %c0_4] : memref<1x128xf32, #tpu.memory_space<vmem>>, vector<1x128xf32>
    %4 = vector.broadcast %3 : vector<1x128xf32> to vector<64x128xf32>
    %5 = arith.addf %2, %4 : vector<64x128xf32>
    %c0_5 = arith.constant 0 : index
    %c0_6 = arith.constant 0 : index
    %6 = vector.load %arg2[%c0_5, %c0_6] : memref<128x128xbf16, #tpu.memory_space<vmem>>, vector<128x128xbf16>
    %7 = vector.extract_strided_slice %5 {offsets = [0, 0], sizes = [8, 128], strides = [1, 1]} : vector<64x128xf32> to vector<8x128xf32>
    %8 = math.tanh %7 : vector<8x128xf32>
    %9 = vector.extract_strided_slice %5 {offsets = [8, 0], sizes = [8, 128], strides = [1, 1]} : vector<64x128xf32> to vector<8x128xf32>
    %10 = arith.truncf %8 : vector<8x128xf32> to vector<8x128xbf16>
    %cst_7 = arith.constant dense<0.000000e+00> : vector<8x128xf32>
    %11 = tpu.matmul %10, %6, %cst_7 {dimension_numbers = #tpu.dot_dimension_numbers<[1], [0], [0], [1], [0, 0, 1, 1], [], []>} : vector<8x128xbf16>, vector<128x128xbf16>, vector<8x128xf32> -> vector<8x128xf32>
    %12 = arith.addf %9, %11 : vector<8x128xf32>
    %13 = math.tanh %12 : vector<8x128xf32>
    %14 = arith.addf %8, %13 : vector<8x128xf32>
    %15 = vector.extract_strided_slice %5 {offsets = [16, 0], sizes = [8, 128], strides = [1, 1]} : vector<64x128xf32> to vector<8x128xf32>
    %16 = arith.truncf %13 : vector<8x128xf32> to vector<8x128xbf16>
    %cst_8 = arith.constant dense<0.000000e+00> : vector<8x128xf32>
    %17 = tpu.matmul %16, %6, %cst_8 {dimension_numbers = #tpu.dot_dimension_numbers<[1], [0], [0], [1], [0, 0, 1, 1], [], []>} : vector<8x128xbf16>, vector<128x128xbf16>, vector<8x128xf32> -> vector<8x128xf32>
    %18 = arith.addf %15, %17 : vector<8x128xf32>
    %19 = math.tanh %18 : vector<8x128xf32>
    %20 = arith.addf %14, %19 : vector<8x128xf32>
    %21 = vector.extract_strided_slice %5 {offsets = [24, 0], sizes = [8, 128], strides = [1, 1]} : vector<64x128xf32> to vector<8x128xf32>
    %22 = arith.truncf %19 : vector<8x128xf32> to vector<8x128xbf16>
    %cst_9 = arith.constant dense<0.000000e+00> : vector<8x128xf32>
    %23 = tpu.matmul %22, %6, %cst_9 {dimension_numbers = #tpu.dot_dimension_numbers<[1], [0], [0], [1], [0, 0, 1, 1], [], []>} : vector<8x128xbf16>, vector<128x128xbf16>, vector<8x128xf32> -> vector<8x128xf32>
    %24 = arith.addf %21, %23 : vector<8x128xf32>
    %25 = math.tanh %24 : vector<8x128xf32>
    %26 = arith.addf %20, %25 : vector<8x128xf32>
    %27 = vector.extract_strided_slice %5 {offsets = [32, 0], sizes = [8, 128], strides = [1, 1]} : vector<64x128xf32> to vector<8x128xf32>
    %28 = arith.truncf %25 : vector<8x128xf32> to vector<8x128xbf16>
    %cst_10 = arith.constant dense<0.000000e+00> : vector<8x128xf32>
    %29 = tpu.matmul %28, %6, %cst_10 {dimension_numbers = #tpu.dot_dimension_numbers<[1], [0], [0], [1], [0, 0, 1, 1], [], []>} : vector<8x128xbf16>, vector<128x128xbf16>, vector<8x128xf32> -> vector<8x128xf32>
    %30 = arith.addf %27, %29 : vector<8x128xf32>
    %31 = math.tanh %30 : vector<8x128xf32>
    %32 = arith.addf %26, %31 : vector<8x128xf32>
    %33 = vector.extract_strided_slice %5 {offsets = [40, 0], sizes = [8, 128], strides = [1, 1]} : vector<64x128xf32> to vector<8x128xf32>
    %34 = arith.truncf %31 : vector<8x128xf32> to vector<8x128xbf16>
    %cst_11 = arith.constant dense<0.000000e+00> : vector<8x128xf32>
    %35 = tpu.matmul %34, %6, %cst_11 {dimension_numbers = #tpu.dot_dimension_numbers<[1], [0], [0], [1], [0, 0, 1, 1], [], []>} : vector<8x128xbf16>, vector<128x128xbf16>, vector<8x128xf32> -> vector<8x128xf32>
    %36 = arith.addf %33, %35 : vector<8x128xf32>
    %37 = math.tanh %36 : vector<8x128xf32>
    %38 = arith.addf %32, %37 : vector<8x128xf32>
    %39 = vector.extract_strided_slice %5 {offsets = [48, 0], sizes = [8, 128], strides = [1, 1]} : vector<64x128xf32> to vector<8x128xf32>
    %40 = arith.truncf %37 : vector<8x128xf32> to vector<8x128xbf16>
    %cst_12 = arith.constant dense<0.000000e+00> : vector<8x128xf32>
    %41 = tpu.matmul %40, %6, %cst_12 {dimension_numbers = #tpu.dot_dimension_numbers<[1], [0], [0], [1], [0, 0, 1, 1], [], []>} : vector<8x128xbf16>, vector<128x128xbf16>, vector<8x128xf32> -> vector<8x128xf32>
    %42 = arith.addf %39, %41 : vector<8x128xf32>
    %43 = math.tanh %42 : vector<8x128xf32>
    %44 = arith.addf %38, %43 : vector<8x128xf32>
    %45 = vector.extract_strided_slice %5 {offsets = [56, 0], sizes = [8, 128], strides = [1, 1]} : vector<64x128xf32> to vector<8x128xf32>
    %46 = arith.truncf %43 : vector<8x128xf32> to vector<8x128xbf16>
    %cst_13 = arith.constant dense<0.000000e+00> : vector<8x128xf32>
    %47 = tpu.matmul %46, %6, %cst_13 {dimension_numbers = #tpu.dot_dimension_numbers<[1], [0], [0], [1], [0, 0, 1, 1], [], []>} : vector<8x128xbf16>, vector<128x128xbf16>, vector<8x128xf32> -> vector<8x128xf32>
    %48 = arith.addf %45, %47 : vector<8x128xf32>
    %49 = math.tanh %48 : vector<8x128xf32>
    %50 = arith.addf %44, %49 : vector<8x128xf32>
    %51 = arith.truncf %50 : vector<8x128xf32> to vector<8x128xbf16>
    %c0_14 = arith.constant 0 : index
    %c0_15 = arith.constant 0 : index
    %52 = vector.load %arg4[%c0_14, %c0_15] : memref<128x2xbf16, #tpu.memory_space<vmem>>, vector<128x2xbf16>
    %cst_16 = arith.constant dense<0.000000e+00> : vector<8x2xf32>
    %53 = tpu.matmul %51, %52, %cst_16 {dimension_numbers = #tpu.dot_dimension_numbers<[1], [0], [0], [1], [0, 0, 1, 1], [], []>} : vector<8x128xbf16>, vector<128x2xbf16>, vector<8x2xf32> -> vector<8x2xf32>
    %c0_17 = arith.constant 0 : index
    %c0_18 = arith.constant 0 : index
    %54 = vector.load %arg5[%c0_17, %c0_18] : memref<1x2xf32, #tpu.memory_space<vmem>>, vector<1x2xf32>
    %55 = vector.broadcast %54 : vector<1x2xf32> to vector<8x2xf32>
    %56 = arith.addf %53, %55 : vector<8x2xf32>
    %c0_19 = arith.constant 0 : index
    %c0_20 = arith.constant 0 : index
    %57 = vector.load %arg6[%c0_19, %c0_20] : memref<8x2xf32, #tpu.memory_space<vmem>>, vector<8x2xf32>
    tpu.vector_store %arg6[%c0_19, %c0_20], %56 {strides = array<i32>} : memref<8x2xf32, #tpu.memory_space<vmem>>, vector<8x2xf32>,
    return
  }
}

</mosaic_0001>

<llo_original>
// kernel: tpu_custom_call.1
$region0: #{tpu_custom_call.1}
  #allocation0 [shape = 'u32[]', space=smem, size = 0x4, offset = 0x4, fixed_abs, tag = 'smem constant byte address 0x4 - core index']
  #allocation1 [shape = 'u32[144,128]{1,0:T(1,128)}', space=vmem, size = 0x12000, scoped, tag = 'internal scratch']
  %s0 = inlined_call_operand.vmem [shape: bf16[64,32], index: 0, kind: input, shape index: {}]
  %s1 = inlined_call_operand.vmem [shape: bf16[32,128], index: 1, kind: input, shape index: {}]
  %s2 = inlined_call_operand.vmem [shape: bf16[128,128], index: 2, kind: input, shape index: {}]
  %s3 = inlined_call_operand.vmem [shape: f32[1,128], index: 3, kind: input, shape index: {}]
  %s4 = inlined_call_operand.vmem [shape: bf16[128,2], index: 4, kind: input, shape index: {}]
  %s5 = inlined_call_operand.vmem [shape: f32[1,2], index: 5, kind: input, shape index: {}]
  %s6 = inlined_call_operand.vmem [shape: f32[8,2], index: 6, kind: output, shape index: {}]
  %s7 = sld [smem:[#allocation0]]
  $region34: #{tpu_custom_call.1} parent=0
    _
  %s9 = ssub.s32 1, %s7
  %s10 = scalar_select 0, %s9, %s7
  // Predicated region
  $region2: #{tpu_custom_call.1} parent=0 // pred_check
    _
  $region3: #{tpu_custom_call.1} parent=0 // pred_check_branch
    %12 = sbr.rel (0) target = $region5
  $region4: #{tpu_custom_call.1} parent=0 // pred_region
    _
  $region5: #{tpu_custom_call.1} parent=0 // pred_fallthru
    _
  // Predicated region
  $region6: #{tpu_custom_call.1} parent=0 // pred_check
    _
  $region7: #{tpu_custom_call.1} parent=0 // pred_check_branch
    %14 = sbr.rel (0) target = $region9
  $region8: #{tpu_custom_call.1} parent=0 // pred_region
    _
  $region9: #{tpu_custom_call.1} parent=0 // pred_fallthru
    _
  // Predicated region
  $region10: #{tpu_custom_call.1} parent=0 // pred_check
    _
  $region11: #{tpu_custom_call.1} parent=0 // pred_check_branch
    %16 = sbr.rel (0) target = $region13
  $region12: #{tpu_custom_call.1} parent=0 // pred_region
    _
  $region13: #{tpu_custom_call.1} parent=0 // pred_fallthru
    _
  // Predicated region
  $region14: #{tpu_custom_call.1} parent=0 // pred_check
    _
  $region15: #{tpu_custom_call.1} parent=0 // pred_check_branch
    %18 = sbr.rel (0) target = $region17
  $region16: #{tpu_custom_call.1} parent=0 // pred_region
    _
  $region17: #{tpu_custom_call.1} parent=0 // pred_fallthru
    _
  // Predicated region
  $region18: #{tpu_custom_call.1} parent=0 // pred_check
    _
  $region19: #{tpu_custom_call.1} parent=0 // pred_check_branch
    %20 = sbr.rel (0) target = $region21
  $region20: #{tpu_custom_call.1} parent=0 // pred_region
    _
  $region21: #{tpu_custom_call.1} parent=0 // pred_fallthru
    _
  // Predicated region
  $region22: #{tpu_custom_call.1} parent=0 // pred_check
    _
  $region23: #{tpu_custom_call.1} parent=0 // pred_check_branch
    %22 = sbr.rel (0) target = $region25
  $region24: #{tpu_custom_call.1} parent=0 // pred_region
    _
  $region25: #{tpu_custom_call.1} parent=0 // pred_fallthru
    _
  %v24 = vld [vmem:[%s0] sm:$0xf]
  %v25 = vld [vmem:[%s0 + $0x4] sm:$0xf]
  %v26 = vld [vmem:[%s0 + $0x8] sm:$0xf]
  %v27 = vld [vmem:[%s0 + $0xc] sm:$0xf]
  %v28 = vld [vmem:[%s0 + $0x10] sm:$0xf]
  %v29 = vld [vmem:[%s0 + $0x14] sm:$0xf]
  %v30 = vld [vmem:[%s0 + $0x18] sm:$0xf]
  %v31 = vld [vmem:[%s0 + $0x1c] sm:$0xf]
  %v32 = vld [vmem:[%s1] sm:$0xf]
  %v33 = vld [vmem:[%s1 + $0x4] sm:$0xf]
  %v34 = vld [vmem:[%s1 + $0x8] sm:$0xf]
  %v35 = vld [vmem:[%s1 + $0xc] sm:$0xf]
  %v36 = vld [vmem:[%s3] sm:$0x1]
  %v38 = vlaneseq
  %v39 = vshrl.u32 %v38, 7
  %v40 = vsub.s32 0, %v39
  %v41 = vrot.slane %v36, %v40
  %v51 = vunpack.c.l.b16 %v24
  %v52 = vunpack.c.l.b16 %v25
  %v53 = vunpack.c.l.b16 %v26
  %v54 = vunpack.c.l.b16 %v27
  %v55 = vunpack.c.l.b16 %v28
  %v56 = vunpack.c.l.b16 %v29
  %v57 = vunpack.c.l.b16 %v30
  %v58 = vunpack.c.l.b16 %v31
  %v59 = vpack.c.b16 %v52, %v51
  %v60 = vpack.c.b16 %v54, %v53
  %v61 = vpack.c.b16 %v56, %v55
  %v62 = vpack.c.b16 %v58, %v57
  %v67 = vunpack.c.l.b16 %v32
  %v68 = vunpack.c.l.b16 %v33
  %v69 = vunpack.c.l.b16 %v34
  %v70 = vunpack.c.l.b16 %v35
  %v71 = vpack.c.b16 %v68, %v67
  %v72 = vpack.c.b16 %v70, %v69
  %vm75 = vcmask 261120
  %v77 = vsel %vm75, %v59, 0
  %v80 = vsel %vm75, %v60, 0
  %v83 = vsel %vm75, %v61, 0
  %v86 = vsel %vm75, %v62, 0
  %88 = vmatprep.subr.bf16.mxu0 0
  %89 = vmatpush1.bf16.msra.mxu0 %v71
  %90 = vmatprep.subr.bf16.mxu0 0
  %91 = vmatpush1.bf16.msra.mxu0 %v72
  %92 = vmatprep.subr.bf16.mxu0 0
  %93 = vmatpush1.bf16.msra.mxu0 0
  %94 = vmatprep.subr.bf16.mxu0 0
  %95 = vmatpush1.bf16.msra.mxu0 0
  %96 = vmatprep.subr.bf16.mxu0 0
  %97 = vmatpush1.bf16.msra.mxu0 0
  %98 = vmatprep.subr.bf16.mxu0 0
  %99 = vmatpush1.bf16.msra.mxu0 0
  %100 = vmatprep.subr.bf16.mxu0 0
  %101 = vmatpush1.bf16.msra.mxu0 0
  %102 = vmatprep.subr.bf16.mxu0 0
  %103 = vmatpush1.bf16.msra.mxu0 0
  %104 = vmatprep.subr.bf16.mxu0 0
  %105 = vmatpush1.bf16.msra.mxu0 0
  %106 = vmatprep.subr.bf16.mxu0 0
  %107 = vmatpush1.bf16.msra.mxu0 0
  %108 = vmatprep.subr.bf16.mxu0 0
  %109 = vmatpush1.bf16.msra.mxu0 0
  %110 = vmatprep.subr.bf16.mxu0 0
  %111 = vmatpush1.bf16.msra.mxu0 0
  %112 = vmatprep.subr.bf16.mxu0 0
  %113 = vmatpush1.bf16.msra.mxu0 0
  %114 = vmatprep.subr.bf16.mxu0 0
  %115 = vmatpush1.bf16.msra.mxu0 0
  %116 = vmatprep.subr.bf16.mxu0 0
  %117 = vmatpush1.bf16.msra.mxu0 0
  %118 = vmatprep.subr.bf16.mxu0 0
  %119 = vmatpush1.bf16.msra.mxu0 0
  %120 = vmatprep.mubr.bf16.mxu0 0
  %121 = vmatmul.mubr.bf16.gmra.mrb[0].mxu0 %v77
  %v122 = vpop.f32.mrb[0].mxu0
  %v123 = vadd.f32 %v41, %v122
  %v124 = vpop.f32.mrb[0].mxu0
  %v125 = vpop.f32.mrb[0].mxu0
  %v126 = vadd.f32 %v41, %v125
  %v127 = vpop.f32.mrb[0].mxu0
  %128 = vmatprep.mubr.bf16.mxu0 0
  %129 = vmatmul.mubr.bf16.gmra.mrb[0].mxu0 %v80
  %v130 = vpop.f32.mrb[0].mxu0
  %v131 = vadd.f32 %v41, %v130
  %v132 = vpop.f32.mrb[0].mxu0
  %v133 = vpop.f32.mrb[0].mxu0
  %v134 = vadd.f32 %v41, %v133
  %v135 = vpop.f32.mrb[0].mxu0
  %136 = vmatprep.mubr.bf16.mxu0 0
  %137 = vmatmul.mubr.bf16.gmra.mrb[0].mxu0 %v83
  %v138 = vpop.f32.mrb[0].mxu0
  %v139 = vadd.f32 %v41, %v138
  %v140 = vpop.f32.mrb[0].mxu0
  %v141 = vpop.f32.mrb[0].mxu0
  %v142 = vadd.f32 %v41, %v141
  %v143 = vpop.f32.mrb[0].mxu0
  %144 = vmatprep.mubr.bf16.mxu0 0
  %145 = vmatmul.mubr.bf16.gmra.mrb[0].mxu0 %v86
  %v146 = vpop.f32.mrb[0].mxu0
  %v147 = vadd.f32 %v41, %v146
  %v148 = vpop.f32.mrb[0].mxu0
  %v149 = vpop.f32.mrb[0].mxu0
  %v150 = vadd.f32 %v41, %v149
  %v151 = vpop.f32.mrb[0].mxu0
  %152 = vdwg.mxu0
  %v153 = vld [vmem:[%s2] sm:$0xf]
  %v154 = vld [vmem:[%s2 + $0x4] sm:$0xf]
  %v155 = vld [vmem:[%s2 + $0x8] sm:$0xf]
  %v156 = vld [vmem:[%s2 + $0xc] sm:$0xf]
  %v157 = vld [vmem:[%s2 + $0x10] sm:$0xf]
  %v158 = vld [vmem:[%s2 + $0x14] sm:$0xf]
  %v159 = vld [vmem:[%s2 + $0x18] sm:$0xf]
  %v160 = vld [vmem:[%s2 + $0x1c] sm:$0xf]
  %v161 = vld [vmem:[%s2 + $0x20] sm:$0xf]
  %v162 = vld [vmem:[%s2 + $0x24] sm:$0xf]
  %v163 = vld [vmem:[%s2 + $0x28] sm:$0xf]
  %v164 = vld [vmem:[%s2 + $0x2c] sm:$0xf]
  %v165 = vld [vmem:[%s2 + $0x30] sm:$0xf]
  %v166 = vld [vmem:[%s2 + $0x34] sm:$0xf]
  %v167 = vld [vmem:[%s2 + $0x38] sm:$0xf]
  %v168 = vld [vmem:[%s2 + $0x3c] sm:$0xf]
  %v169 = vtanh.pop %v123
  %v170 = vpack.c.bf16 %v169, %v169
  %v187 = vunpack.c.l.b16 %v153
  %v188 = vunpack.c.l.b16 %v154
  %v189 = vunpack.c.l.b16 %v155
  %v190 = vunpack.c.l.b16 %v156
  %v191 = vunpack.c.l.b16 %v157
  %v192 = vunpack.c.l.b16 %v158
  %v193 = vunpack.c.l.b16 %v159
  %v194 = vunpack.c.l.b16 %v160
  %v195 = vunpack.c.l.b16 %v161
  %v196 = vunpack.c.l.b16 %v162
  %v197 = vunpack.c.l.b16 %v163
  %v198 = vunpack.c.l.b16 %v164
  %v199 = vunpack.c.l.b16 %v165
  %v200 = vunpack.c.l.b16 %v166
  %v201 = vunpack.c.l.b16 %v167
  %v202 = vunpack.c.l.b16 %v168
  %v203 = vpack.c.b16 %v188, %v187
  %v204 = vpack.c.b16 %v190, %v189
  %v205 = vpack.c.b16 %v192, %v191
  %v206 = vpack.c.b16 %v194, %v193
  %v207 = vpack.c.b16 %v196, %v195
  %v208 = vpack.c.b16 %v198, %v197
  %v209 = vpack.c.b16 %v200, %v199
  %v210 = vpack.c.b16 %v202, %v201
  %219 = vmatprep.subr.bf16.mxu0 0
  %220 = vmatpush1.bf16.msra.mxu0 %v203
  %221 = vmatprep.subr.bf16.mxu0 0
  %222 = vmatpush1.bf16.msra.mxu0 %v204
  %223 = vmatprep.subr.bf16.mxu0 0
  %224 = vmatpush1.bf16.msra.mxu0 %v205
  %225 = vmatprep.subr.bf16.mxu0 0
  %226 = vmatpush1.bf16.msra.mxu0 %v206
  %227 = vmatprep.subr.bf16.mxu0 0
  %228 = vmatpush1.bf16.msra.mxu0 %v207
  %229 = vmatprep.subr.bf16.mxu0 0
  %230 = vmatpush1.bf16.msra.mxu0 %v208
  %231 = vmatprep.subr.bf16.mxu0 0
  %232 = vmatpush1.bf16.msra.mxu0 %v209
  %233 = vmatprep.subr.bf16.mxu0 0
  %234 = vmatpush1.bf16.msra.mxu0 %v210
  %235 = vmatprep.subr.bf16.mxu0 0
  %236 = vmatpush1.bf16.msra.mxu0 0
  %237 = vmatprep.subr.bf16.mxu0 0
  %238 = vmatpush1.bf16.msra.mxu0 0
  %239 = vmatprep.subr.bf16.mxu0 0
  %240 = vmatpush1.bf16.msra.mxu0 0
  %241 = vmatprep.subr.bf16.mxu0 0
  %242 = vmatpush1.bf16.msra.mxu0 0
  %243 = vmatprep.subr.bf16.mxu0 0
  %244 = vmatpush1.bf16.msra.mxu0 0
  %245 = vmatprep.subr.bf16.mxu0 0
  %246 = vmatpush1.bf16.msra.mxu0 0
  %247 = vmatprep.subr.bf16.mxu0 0
  %248 = vmatpush1.bf16.msra.mxu0 0
  %249 = vmatprep.subr.bf16.mxu0 0
  %250 = vmatpush1.bf16.msra.mxu0 0
  %251 = vmatprep.mubr.bf16.mxu0 0
  %252 = vmatmul.mubr.bf16.gmra.mrb[0].mxu0 %v170
  %v253 = vpop.f32.mrb[0].mxu0
  %v254 = vadd.f32 0.0, %v253
  %v255 = vpop.f32.mrb[0].mxu0
  %v256 = vpop.f32.mrb[0].mxu0
  %v257 = vpop.f32.mrb[0].mxu0
  %258 = vdwg.mxu0
  %v259 = vadd.f32 %v126, %v254
  %v260 = vtanh.pop %v259
  %v261 = vadd.f32 %v169, %v260
  %v262 = vpack.c.bf16 %v260, %v260
  %263 = vmatprep.subr.bf16.mxu0 0
  %264 = vmatpush1.bf16.msra.mxu0 %v203
  %265 = vmatprep.subr.bf16.mxu0 0
  %266 = vmatpush1.bf16.msra.mxu0 %v204
  %267 = vmatprep.subr.bf16.mxu0 0
  %268 = vmatpush1.bf16.msra.mxu0 %v205
  %269 = vmatprep.subr.bf16.mxu0 0
  %270 = vmatpush1.bf16.msra.mxu0 %v206
  %271 = vmatprep.subr.bf16.mxu0 0
  %272 = vmatpush1.bf16.msra.mxu0 %v207
  %273 = vmatprep.subr.bf16.mxu0 0
  %274 = vmatpush1.bf16.msra.mxu0 %v208
  %275 = vmatprep.subr.bf16.mxu0 0
  %276 = vmatpush1.bf16.msra.mxu0 %v209
  %277 = vmatprep.subr.bf16.mxu0 0
  %278 = vmatpush1.bf16.msra.mxu0 %v210
  %279 = vmatprep.subr.bf16.mxu0 0
  %280 = vmatpush1.bf16.msra.mxu0 0
  %281 = vmatprep.subr.bf16.mxu0 0
  %282 = vmatpush1.bf16.msra.mxu0 0
  %283 = vmatprep.subr.bf16.mxu0 0
  %284 = vmatpush1.bf16.msra.mxu0 0
  %285 = vmatprep.subr.bf16.mxu0 0
  %286 = vmatpush1.bf16.msra.mxu0 0
  %287 = vmatprep.subr.bf16.mxu0 0
  %288 = vmatpush1.bf16.msra.mxu0 0
  %289 = vmatprep.subr.bf16.mxu0 0
  %290 = vmatpush1.bf16.msra.mxu0 0
  %291 = vmatprep.subr.bf16.mxu0 0
  %292 = vmatpush1.bf16.msra.mxu0 0
  %293 = vmatprep.subr.bf16.mxu0 0
  %294 = vmatpush1.bf16.msra.mxu0 0
  %295 = vmatprep.mubr.bf16.mxu0 0
  %296 = vmatmul.mubr.bf16.gmra.mrb[0].mxu0 %v262
  %v297 = vpop.f32.mrb[0].mxu0
  %v298 = vadd.f32 0.0, %v297
  %v299 = vpop.f32.mrb[0].mxu0
  %v300 = vpop.f32.mrb[0].mxu0
  %v301 = vpop.f32.mrb[0].mxu0
  %302 = vdwg.mxu0
  %v303 = vadd.f32 %v131, %v298
  %v304 = vtanh.pop %v303
  %v305 = vadd.f32 %v261, %v304
  %v306 = vpack.c.bf16 %v304, %v304
  %307 = vmatprep.subr.bf16.mxu0 0
  %308 = vmatpush1.bf16.msra.mxu0 %v203
  %309 = vmatprep.subr.bf16.mxu0 0
  %310 = vmatpush1.bf16.msra.mxu0 %v204
  %311 = vmatprep.subr.bf16.mxu0 0
  %312 = vmatpush1.bf16.msra.mxu0 %v205
  %313 = vmatprep.subr.bf16.mxu0 0
  %314 = vmatpush1.bf16.msra.mxu0 %v206
  %315 = vmatprep.subr.bf16.mxu0 0
  %316 = vmatpush1.bf16.msra.mxu0 %v207
  %317 = vmatprep.subr.bf16.mxu0 0
  %318 = vmatpush1.bf16.msra.mxu0 %v208
  %319 = vmatprep.subr.bf16.mxu0 0
  %320 = vmatpush1.bf16.msra.mxu0 %v209
  %321 = vmatprep.subr.bf16.mxu0 0
  %322 = vmatpush1.bf16.msra.mxu0 %v210
  %323 = vmatprep.subr.bf16.mxu0 0
  %324 = vmatpush1.bf16.msra.mxu0 0
  %325 = vmatprep.subr.bf16.mxu0 0
  %326 = vmatpush1.bf16.msra.mxu0 0
  %327 = vmatprep.subr.bf16.mxu0 0
  %328 = vmatpush1.bf16.msra.mxu0 0
  %329 = vmatprep.subr.bf16.mxu0 0
  %330 = vmatpush1.bf16.msra.mxu0 0
  %331 = vmatprep.subr.bf16.mxu0 0
  %332 = vmatpush1.bf16.msra.mxu0 0
  %333 = vmatprep.subr.bf16.mxu0 0
  %334 = vmatpush1.bf16.msra.mxu0 0
  %335 = vmatprep.subr.bf16.mxu0 0
  %336 = vmatpush1.bf16.msra.mxu0 0
  %337 = vmatprep.subr.bf16.mxu0 0
  %338 = vmatpush1.bf16.msra.mxu0 0
  %339 = vmatprep.mubr.bf16.mxu0 0
  %340 = vmatmul.mubr.bf16.gmra.mrb[0].mxu0 %v306
  %v341 = vpop.f32.mrb[0].mxu0
  %v342 = vadd.f32 0.0, %v341
  %v343 = vpop.f32.mrb[0].mxu0
  %v344 = vpop.f32.mrb[0].mxu0
  %v345 = vpop.f32.mrb[0].mxu0
  %346 = vdwg.mxu0
  %v347 = vadd.f32 %v134, %v342
  %v348 = vtanh.pop %v347
  %v349 = vadd.f32 %v305, %v348
  %v350 = vpack.c.bf16 %v348, %v348
  %351 = vmatprep.subr.bf16.mxu0 0
  %352 = vmatpush1.bf16.msra.mxu0 %v203
  %353 = vmatprep.subr.bf16.mxu0 0
  %354 = vmatpush1.bf16.msra.mxu0 %v204
  %355 = vmatprep.subr.bf16.mxu0 0
  %356 = vmatpush1.bf16.msra.mxu0 %v205
  %357 = vmatprep.subr.bf16.mxu0 0
  %358 = vmatpush1.bf16.msra.mxu0 %v206
  %359 = vmatprep.subr.bf16.mxu0 0
  %360 = vmatpush1.bf16.msra.mxu0 %v207
  %361 = vmatprep.subr.bf16.mxu0 0
  %362 = vmatpush1.bf16.msra.mxu0 %v208
  %363 = vmatprep.subr.bf16.mxu0 0
  %364 = vmatpush1.bf16.msra.mxu0 %v209
  %365 = vmatprep.subr.bf16.mxu0 0
  %366 = vmatpush1.bf16.msra.mxu0 %v210
  %367 = vmatprep.subr.bf16.mxu0 0
  %368 = vmatpush1.bf16.msra.mxu0 0
  %369 = vmatprep.subr.bf16.mxu0 0
  %370 = vmatpush1.bf16.msra.mxu0 0
  %371 = vmatprep.subr.bf16.mxu0 0
  %372 = vmatpush1.bf16.msra.mxu0 0
  %373 = vmatprep.subr.bf16.mxu0 0
  %374 = vmatpush1.bf16.msra.mxu0 0
  %375 = vmatprep.subr.bf16.mxu0 0
  %376 = vmatpush1.bf16.msra.mxu0 0
  %377 = vmatprep.subr.bf16.mxu0 0
  %378 = vmatpush1.bf16.msra.mxu0 0
  %379 = vmatprep.subr.bf16.mxu0 0
  %380 = vmatpush1.bf16.msra.mxu0 0
  %381 = vmatprep.subr.bf16.mxu0 0
  %382 = vmatpush1.bf16.msra.mxu0 0
  %383 = vmatprep.mubr.bf16.mxu0 0
  %384 = vmatmul.mubr.bf16.gmra.mrb[0].mxu0 %v350
  %v385 = vpop.f32.mrb[0].mxu0
  %v386 = vadd.f32 0.0, %v385
  %v387 = vpop.f32.mrb[0].mxu0
  %v388 = vpop.f32.mrb[0].mxu0
  %v389 = vpop.f32.mrb[0].mxu0
  %390 = vdwg.mxu0
  %v391 = vadd.f32 %v139, %v386
  %v392 = vtanh.pop %v391
  %v393 = vadd.f32 %v349, %v392
  %v394 = vpack.c.bf16 %v392, %v392
  %395 = vmatprep.subr.bf16.mxu0 0
  %396 = vmatpush1.bf16.msra.mxu0 %v203
  %397 = vmatprep.subr.bf16.mxu0 0
  %398 = vmatpush1.bf16.msra.mxu0 %v204
  %399 = vmatprep.subr.bf16.mxu0 0
  %400 = vmatpush1.bf16.msra.mxu0 %v205
  %401 = vmatprep.subr.bf16.mxu0 0
  %402 = vmatpush1.bf16.msra.mxu0 %v206
  %403 = vmatprep.subr.bf16.mxu0 0
  %404 = vmatpush1.bf16.msra.mxu0 %v207
  %405 = vmatprep.subr.bf16.mxu0 0
  %406 = vmatpush1.bf16.msra.mxu0 %v208
  %407 = vmatprep.subr.bf16.mxu0 0
  %408 = vmatpush1.bf16.msra.mxu0 %v209
  %409 = vmatprep.subr.bf16.mxu0 0
  %410 = vmatpush1.bf16.msra.mxu0 %v210
  %411 = vmatprep.subr.bf16.mxu0 0
  %412 = vmatpush1.bf16.msra.mxu0 0
  %413 = vmatprep.subr.bf16.mxu0 0
  %414 = vmatpush1.bf16.msra.mxu0 0
  %415 = vmatprep.subr.bf16.mxu0 0
  %416 = vmatpush1.bf16.msra.mxu0 0
  %417 = vmatprep.subr.bf16.mxu0 0
  %418 = vmatpush1.bf16.msra.mxu0 0
  %419 = vmatprep.subr.bf16.mxu0 0
  %420 = vmatpush1.bf16.msra.mxu0 0
  %421 = vmatprep.subr.bf16.mxu0 0
  %422 = vmatpush1.bf16.msra.mxu0 0
  %423 = vmatprep.subr.bf16.mxu0 0
  %424 = vmatpush1.bf16.msra.mxu0 0
  %425 = vmatprep.subr.bf16.mxu0 0
  %426 = vmatpush1.bf16.msra.mxu0 0
  %427 = vmatprep.mubr.bf16.mxu0 0
  %428 = vmatmul.mubr.bf16.gmra.mrb[0].mxu0 %v394
  %v429 = vpop.f32.mrb[0].mxu0
  %v430 = vadd.f32 0.0, %v429
  %v431 = vpop.f32.mrb[0].mxu0
  %v432 = vpop.f32.mrb[0].mxu0
  %v433 = vpop.f32.mrb[0].mxu0
  %434 = vdwg.mxu0
  %v435 = vadd.f32 %v142, %v430
  %v436 = vtanh.pop %v435
  %v437 = vadd.f32 %v393, %v436
  %v438 = vpack.c.bf16 %v436, %v436
  %439 = vmatprep.subr.bf16.mxu0 0
  %440 = vmatpush1.bf16.msra.mxu0 %v203
  %441 = vmatprep.subr.bf16.mxu0 0
  %442 = vmatpush1.bf16.msra.mxu0 %v204
  %443 = vmatprep.subr.bf16.mxu0 0
  %444 = vmatpush1.bf16.msra.mxu0 %v205
  %445 = vmatprep.subr.bf16.mxu0 0
  %446 = vmatpush1.bf16.msra.mxu0 %v206
  %447 = vmatprep.subr.bf16.mxu0 0
  %448 = vmatpush1.bf16.msra.mxu0 %v207
  %449 = vmatprep.subr.bf16.mxu0 0
  %450 = vmatpush1.bf16.msra.mxu0 %v208
  %451 = vmatprep.subr.bf16.mxu0 0
  %452 = vmatpush1.bf16.msra.mxu0 %v209
  %453 = vmatprep.subr.bf16.mxu0 0
  %454 = vmatpush1.bf16.msra.mxu0 %v210
  %455 = vmatprep.subr.bf16.mxu0 0
  %456 = vmatpush1.bf16.msra.mxu0 0
  %457 = vmatprep.subr.bf16.mxu0 0
  %458 = vmatpush1.bf16.msra.mxu0 0
  %459 = vmatprep.subr.bf16.mxu0 0
  %460 = vmatpush1.bf16.msra.mxu0 0
  %461 = vmatprep.subr.bf16.mxu0 0
  %462 = vmatpush1.bf16.msra.mxu0 0
  %463 = vmatprep.subr.bf16.mxu0 0
  %464 = vmatpush1.bf16.msra.mxu0 0
  %465 = vmatprep.subr.bf16.mxu0 0
  %466 = vmatpush1.bf16.msra.mxu0 0
  %467 = vmatprep.subr.bf16.mxu0 0
  %468 = vmatpush1.bf16.msra.mxu0 0
  %469 = vmatprep.subr.bf16.mxu0 0
  %470 = vmatpush1.bf16.msra.mxu0 0
  %471 = vmatprep.mubr.bf16.mxu0 0
  %472 = vmatmul.mubr.bf16.gmra.mrb[0].mxu0 %v438
  %v473 = vpop.f32.mrb[0].mxu0
  %v474 = vadd.f32 0.0, %v473
  %v475 = vpop.f32.mrb[0].mxu0
  %v476 = vpop.f32.mrb[0].mxu0
  %v477 = vpop.f32.mrb[0].mxu0
  %478 = vdwg.mxu0
  %v479 = vadd.f32 %v147, %v474
  %v480 = vtanh.pop %v479
  %v481 = vadd.f32 %v437, %v480
  %v482 = vpack.c.bf16 %v480, %v480
  %483 = vmatprep.subr.bf16.mxu0 0
  %484 = vmatpush1.bf16.msra.mxu0 %v203
  %485 = vmatprep.subr.bf16.mxu0 0
  %486 = vmatpush1.bf16.msra.mxu0 %v204
  %487 = vmatprep.subr.bf16.mxu0 0
  %488 = vmatpush1.bf16.msra.mxu0 %v205
  %489 = vmatprep.subr.bf16.mxu0 0
  %490 = vmatpush1.bf16.msra.mxu0 %v206
  %491 = vmatprep.subr.bf16.mxu0 0
  %492 = vmatpush1.bf16.msra.mxu0 %v207
  %493 = vmatprep.subr.bf16.mxu0 0
  %494 = vmatpush1.bf16.msra.mxu0 %v208
  %495 = vmatprep.subr.bf16.mxu0 0
  %496 = vmatpush1.bf16.msra.mxu0 %v209
  %497 = vmatprep.subr.bf16.mxu0 0
  %498 = vmatpush1.bf16.msra.mxu0 %v210
  %499 = vmatprep.subr.bf16.mxu0 0
  %500 = vmatpush1.bf16.msra.mxu0 0
  %501 = vmatprep.subr.bf16.mxu0 0
  %502 = vmatpush1.bf16.msra.mxu0 0
  %503 = vmatprep.subr.bf16.mxu0 0
  %504 = vmatpush1.bf16.msra.mxu0 0
  %505 = vmatprep.subr.bf16.mxu0 0
  %506 = vmatpush1.bf16.msra.mxu0 0
  %507 = vmatprep.subr.bf16.mxu0 0
  %508 = vmatpush1.bf16.msra.mxu0 0
  %509 = vmatprep.subr.bf16.mxu0 0
  %510 = vmatpush1.bf16.msra.mxu0 0
  %511 = vmatprep.subr.bf16.mxu0 0
  %512 = vmatpush1.bf16.msra.mxu0 0
  %513 = vmatprep.subr.bf16.mxu0 0
  %514 = vmatpush1.bf16.msra.mxu0 0
  %515 = vmatprep.mubr.bf16.mxu0 0
  %516 = vmatmul.mubr.bf16.gmra.mrb[0].mxu0 %v482
  %v517 = vpop.f32.mrb[0].mxu0
  %v518 = vadd.f32 0.0, %v517
  %v519 = vpop.f32.mrb[0].mxu0
  %v520 = vpop.f32.mrb[0].mxu0
  %v521 = vpop.f32.mrb[0].mxu0
  %522 = vdwg.mxu0
  %v523 = vadd.f32 %v150, %v518
  %v524 = vtanh.pop %v523
  %v525 = vadd.f32 %v481, %v524
  %v526 = vpack.c.bf16 %v525, %v525
  %v527 = vld [vmem:[%s4] sm:$0xf]
  %v528 = vld [vmem:[%s4 + $0x4] sm:$0xf]
  %v529 = vld [vmem:[%s4 + $0x8] sm:$0xf]
  %v530 = vld [vmem:[%s4 + $0xc] sm:$0xf]
  %v531 = vld [vmem:[%s4 + $0x10] sm:$0xf]
  %v532 = vld [vmem:[%s4 + $0x14] sm:$0xf]
  %v533 = vld [vmem:[%s4 + $0x18] sm:$0xf]
  %v534 = vld [vmem:[%s4 + $0x1c] sm:$0xf]
  %v535 = vld [vmem:[%s4 + $0x20] sm:$0xf]
  %v536 = vld [vmem:[%s4 + $0x24] sm:$0xf]
  %v537 = vld [vmem:[%s4 + $0x28] sm:$0xf]
  %v538 = vld [vmem:[%s4 + $0x2c] sm:$0xf]
  %v539 = vld [vmem:[%s4 + $0x30] sm:$0xf]
  %v540 = vld [vmem:[%s4 + $0x34] sm:$0xf]
  %v541 = vld [vmem:[%s4 + $0x38] sm:$0xf]
  %v542 = vld [vmem:[%s4 + $0x3c] sm:$0xf]
  %v543 = vld [vmem:[%s5] sm:$0x1]
  %v545 = vlaneseq
  %v546 = vshrl.u32 %v545, 7
  %v547 = vsub.s32 0, %v546
  %v548 = vrot.slane %v543, %v547
  %v566 = vunpack.c.l.b16 %v527
  %v567 = vunpack.c.l.b16 %v528
  %v568 = vunpack.c.l.b16 %v529
  %v569 = vunpack.c.l.b16 %v530
  %v570 = vunpack.c.l.b16 %v531
  %v571 = vunpack.c.l.b16 %v532
  %v572 = vunpack.c.l.b16 %v533
  %v573 = vunpack.c.l.b16 %v534
  %v574 = vunpack.c.l.b16 %v535
  %v575 = vunpack.c.l.b16 %v536
  %v576 = vunpack.c.l.b16 %v537
  %v577 = vunpack.c.l.b16 %v538
  %v578 = vunpack.c.l.b16 %v539
  %v579 = vunpack.c.l.b16 %v540
  %v580 = vunpack.c.l.b16 %v541
  %v581 = vunpack.c.l.b16 %v542
  %v582 = vpack.c.b16 %v567, %v566
  %v583 = vpack.c.b16 %v569, %v568
  %v584 = vpack.c.b16 %v571, %v570
  %v585 = vpack.c.b16 %v573, %v572
  %v586 = vpack.c.b16 %v575, %v574
  %v587 = vpack.c.b16 %v577, %v576
  %v588 = vpack.c.b16 %v579, %v578
  %v589 = vpack.c.b16 %v581, %v580
  %598 = vmatprep.subr.bf16.mxu0 0
  %599 = vmatpush1.bf16.msra.mxu0 %v582
  %600 = vmatprep.subr.bf16.mxu0 0
  %601 = vmatpush1.bf16.msra.mxu0 %v583
  %602 = vmatprep.subr.bf16.mxu0 0
  %603 = vmatpush1.bf16.msra.mxu0 %v584
  %604 = vmatprep.subr.bf16.mxu0 0
  %605 = vmatpush1.bf16.msra.mxu0 %v585
  %606 = vmatprep.subr.bf16.mxu0 0
  %607 = vmatpush1.bf16.msra.mxu0 %v586
  %608 = vmatprep.subr.bf16.mxu0 0
  %609 = vmatpush1.bf16.msra.mxu0 %v587
  %610 = vmatprep.subr.bf16.mxu0 0
  %611 = vmatpush1.bf16.msra.mxu0 %v588
  %612 = vmatprep.subr.bf16.mxu0 0
  %613 = vmatpush1.bf16.msra.mxu0 %v589
  %614 = vmatprep.subr.bf16.mxu0 0
  %615 = vmatpush1.bf16.msra.mxu0 0
  %616 = vmatprep.subr.bf16.mxu0 0
  %617 = vmatpush1.bf16.msra.mxu0 0
  %618 = vmatprep.subr.bf16.mxu0 0
  %619 = vmatpush1.bf16.msra.mxu0 0
  %620 = vmatprep.subr.bf16.mxu0 0
  %621 = vmatpush1.bf16.msra.mxu0 0
  %622 = vmatprep.subr.bf16.mxu0 0
  %623 = vmatpush1.bf16.msra.mxu0 0
  %624 = vmatprep.subr.bf16.mxu0 0
  %625 = vmatpush1.bf16.msra.mxu0 0
  %626 = vmatprep.subr.bf16.mxu0 0
  %627 = vmatpush1.bf16.msra.mxu0 0
  %628 = vmatprep.subr.bf16.mxu0 0
  %629 = vmatpush1.bf16.msra.mxu0 0
  %630 = vmatprep.mubr.bf16.mxu0 0
  %631 = vmatmul.mubr.bf16.gmra.mrb[0].mxu0 %v526
  %v632 = vpop.f32.mrb[0].mxu0
  %v633 = vadd.f32 %v548, %v632
  %v634 = vpop.f32.mrb[0].mxu0
  %v635 = vpop.f32.mrb[0].mxu0
  %v636 = vpop.f32.mrb[0].mxu0
  %637 = vdwg.mxu0
  %vm638 = vcmask 15360
  %639 = vst.msk [vmem:[%s6] sm:$0xff] %vm638, %v633
  // Predicated region
  $region26: #{tpu_custom_call.1} parent=0 // pred_check
    _
  $region27: #{tpu_custom_call.1} parent=0 // pred_check_branch
    %641 = sbr.rel (0) target = $region29
  $region28: #{tpu_custom_call.1} parent=0 // pred_region
    _
  $region29: #{tpu_custom_call.1} parent=0 // pred_fallthru
    _
  // Predicated region
  $region30: #{tpu_custom_call.1} parent=0 // pred_check
    _
  $region31: #{tpu_custom_call.1} parent=0 // pred_check_branch
    %643 = sbr.rel (0) target = $region33
  $region32: #{tpu_custom_call.1} parent=0 // pred_region
    _
  $region33: #{tpu_custom_call.1} parent=0 // pred_fallthru
    _

</llo_original>
